<compile_context>
chip_gen: v5e
topology: v5e:2x2
jax: 0.10.0
libtpu: 0.0.40
codegen_flags: <defaults>
</compile_context>

<pallas_src>
import functools

import jax
import jax.numpy as jnp
from jax import lax
from jax.experimental import pallas as pl
from jax.experimental.pallas import tpu as pltpu

_CHUNK = 512   # in-kernel lane-chunk width (multiple of 128)
_SUB = 8       # sublane alignment for parameter-slab row offsets


def _round_up(n, m):
    return ((n + m - 1) // m) * m


def _cdiv(a, b):
    return -(-a // b)


def _pack_params(params):
    """Pack the 3 Linear layers into one sublane-aligned, VMEM-resident slab.

    Each layer is stored as the augmented matrix [[W, b], [0, 1]] so that with a
    ones row appended to the activations, relu(W_aug @ x_aug) both applies the
    bias and regenerates the ones row for the next layer (relu(1) == 1).
    """
    w1, b1, w2, b2, w3, b3 = params
    h1, in_f = w1.shape
    h2 = w2.shape[0]
    out_f = w3.shape[0]

    in_a, h1_a, h2_a = in_f + 1, h1 + 1, h2 + 1
    r1 = 0
    r2 = _round_up(r1 + h1_a, _SUB)            # 16
    r3 = _round_up(r2 + h2_a, _SUB)            # 32
    rows = _round_up(r3 + out_f, _SUB)         # 40
    cols = 128                                 # one lane tile wide

    def aug(w, b, keep_ones_row):
        h, fin = w.shape
        m = jnp.zeros((h + 1, fin + 1), jnp.float32)
        m = m.at[:h, :fin].set(w.astype(jnp.float32))
        m = m.at[:h, fin].set(b.astype(jnp.float32))
        m = m.at[h, fin].set(1.0)
        return m if keep_ones_row else m[:h]

    slab = jnp.zeros((rows, cols), jnp.float32)
    slab = slab.at[r1:r1 + h1_a, 0:in_a].set(aug(w1, b1, True))
    slab = slab.at[r2:r2 + h2_a, 0:h1_a].set(aug(w2, b2, True))
    slab = slab.at[r3:r3 + out_f, 0:h2_a].set(aug(w3, b3, False))
    return slab, (in_a, h1_a, h2_a, out_f, r1, r2, r3)


def _make_kernel(in_a, h1_a, h2_a, out_f, r1, r2, r3, chunk, num_chunks):
    """Fused 3-layer MLP over one (in_a, TB) batch tile; chunked over lanes."""

    def kernel(x_ref, p_ref, o_ref):
        # Static, sublane-aligned slab views: loaded once per grid step.
        w1 = p_ref[r1:r1 + h1_a, 0:in_a]        # (h1+1, in_f+1)  incl. bias col + ones row
        w2 = p_ref[r2:r2 + h2_a, 0:h1_a]        # (h2+1, h1+1)
        w3 = p_ref[r3:r3 + out_f, 0:h2_a]       # (out,  h2+1)

        def body(c, carry):
            start = pl.multiple_of(c * chunk, chunk)
            xc = x_ref[:, pl.ds(start, chunk)]                      # (in_f+1, CH)
            a1 = jnp.maximum(
                jnp.dot(w1, xc, preferred_element_type=jnp.float32), 0.0)
            a2 = jnp.maximum(
                jnp.dot(w2, a1, preferred_element_type=jnp.float32), 0.0)
            y = jnp.dot(w3, a2, preferred_element_type=jnp.float32)
            o_ref[:, pl.ds(start, chunk)] = y.astype(o_ref.dtype)   # lane-dense store
            return carry

        lax.fori_loop(0, num_chunks, body, 0, unroll=min(num_chunks, 4))

    return kernel


@functools.partial(jax.jit, static_argnames=("tb_max",))
def csv_model_forward(x, params, tb_max=16384):
    """x: (B, in_features) -> (B, out_features), matching the PyTorch module."""
    slab, dims = _pack_params(params)
    in_a, h1_a, h2_a, out_f, r1, r2, r3 = dims
    B = x.shape[0]

    # Big lane-dense batch tiles (multiple of _CHUNK) to amortize per-step
    # overhead; aim for ~8 (even) steps on large batches so the "parallel"
    # grid axis can be split across v7x's two TensorCores.
    tb_cap = max(_CHUNK, (tb_max // _CHUNK) * _CHUNK)
    tb = min(tb_cap, max(_CHUNK, _round_up(_cdiv(B, 8), _CHUNK)))
    num_steps = _cdiv(B, tb)
    if num_steps > 1 and num_steps % 2 == 1:
        num_steps += 1                      # even step count for megacore balance
    Bp = num_steps * tb

    # Single fused pad (the transpose fuses into it): batch on lanes, plus one
    # all-ones row carrying the bias term. Padded batch columns also read 1.0,
    # producing harmless garbage that is sliced off below.
    xT = jnp.pad(x.astype(jnp.float32).T, ((0, 1), (0, Bp - B)),
                 constant_values=1.0)                               # (in_f+1, Bp)

    kernel = _make_kernel(in_a, h1_a, h2_a, out_f, r1, r2, r3,
                          _CHUNK, tb // _CHUNK)

    flops = 2 * Bp * (in_a * h1_a + h1_a * h2_a + h2_a * out_f)
    bytes_accessed = 4 * (Bp * (in_a + out_f) + slab.size)

    yT = pl.pallas_call(
        kernel,
        out_shape=jax.ShapeDtypeStruct((out_f, Bp), jnp.float32),
        grid_spec=pltpu.PrefetchScalarGridSpec(
            num_scalar_prefetch=0,
            grid=(num_steps,),
            in_specs=[
                # Activations: tiled over the lane (batch) axis, double-buffered.
                pl.BlockSpec((in_a, tb), lambda i: (0, i)),
                # Parameter slab: constant block index -> single DMA, VMEM-resident.
                pl.BlockSpec(slab.shape, lambda i: (0, 0)),
            ],
            out_specs=pl.BlockSpec((out_f, tb), lambda i: (0, i)),
        ),
        compiler_params=pltpu.CompilerParams(
            dimension_semantics=("parallel",),   # shard batch steps across TCs (v7x)
            vmem_limit_bytes=32 * 1024 * 1024,   # ample on v5e/v6e/v7x at these tiles
        ),
        cost_estimate=pl.CostEstimate(
            flops=flops, transcendentals=0, bytes_accessed=bytes_accessed),
    )(xT, slab)

    return yT[:, :B].T                                              # (B, out_f)


def init_params(key, in_features=7, h1=8, h2=9, out_features=1):
    # PyTorch nn.Linear layout + init: W (out, in), b (out,), U(-1/sqrt(in), 1/sqrt(in)).
    ks = jax.random.split(key, 6)

    def lin(kw, kb, fan_in, fan_out):
        bound = 1.0 / (float(fan_in) ** 0.5)
        w = jax.random.uniform(kw, (fan_out, fan_in), jnp.float32, -bound, bound)
        b = jax.random.uniform(kb, (fan_out,), jnp.float32, -bound, bound)
        return w, b

    w1, b1 = lin(ks[0], ks[1], in_features, h1)
    w2, b2 = lin(ks[2], ks[3], h1, h2)
    w3, b3 = lin(ks[4], ks[5], h2, out_features)
    return (w1, b1, w2, b2, w3, b3)


def reference_forward(x, params):
    w1, b1, w2, b2, w3, b3 = params
    hp = lax.Precision.HIGHEST
    h = jnp.maximum(jnp.dot(x, w1.T, precision=hp) + b1, 0.0)
    h = jnp.maximum(jnp.dot(h, w2.T, precision=hp) + b2, 0.0)
    return jnp.dot(h, w3.T, precision=hp) + b3


if __name__ == "__main__":
    key = jax.random.PRNGKey(0)
    k_params, k_x1, k_x2 = jax.random.split(key, 3)

    params = init_params(k_params, in_features=7, h1=8, h2=9, out_features=1)

    # Small batch (single grid step, one in-kernel chunk).
    x_small = jax.random.normal(k_x1, (8, 7), jnp.float32)
    y_small = jax.block_until_ready(csv_model_forward(x_small, params))
    y_small_ref = reference_forward(x_small, params)
    assert y_small.shape == (8, 1)
    assert jnp.allclose(y_small, y_small_ref, atol=1e-4, rtol=1e-4)

    # Ragged batch exercising the pipelined, even-step batch grid.
    x_big = jax.random.normal(k_x2, (1030, 7), jnp.float32)
    y_big = jax.block_until_ready(csv_model_forward(x_big, params))
    y_big_ref = reference_forward(x_big, params)
    assert y_big.shape == (1030, 1)
    assert jnp.allclose(y_big, y_big_ref, atol=1e-4, rtol=1e-4)

    print("KERNEL_OK")
</pallas_src>

<mosaic_0001>
module attributes {stable_mosaic.version = 11 : i64} {
  func.func @kernel(%arg0: i32, %arg1: memref<8x512xf32, #tpu.memory_space<vmem>>, %arg2: memref<40x128xf32, #tpu.memory_space<vmem>>, %arg3: memref<1x512xf32, #tpu.memory_space<vmem>>) attributes {dimension_semantics = [#tpu.dimension_semantics<parallel>], iteration_bounds = array<i64: 1>, scalar_prefetch = 0 : i64, scratch_operands = 0 : i64, tpu.core_type = #tpu.core_type<tc>, window_params = [{transform_indices = @transform_0, window_bounds = array<i64: 8, 512>}, {pipeline_mode = #tpu.pipeline_mode<synchronous>, transform_indices = @transform_1, window_bounds = array<i64: 40, 128>}, {transform_indices = @transform_2, window_bounds = array<i64: 1, 512>}]} {
    %c0 = arith.constant 0 : index
    %c0_0 = arith.constant 0 : index
    %0 = vector.load %arg2[%c0, %c0_0] : memref<40x128xf32, #tpu.memory_space<vmem>>, vector<9x8xf32>
    %c16 = arith.constant 16 : index
    %c0_1 = arith.constant 0 : index
    %1 = vector.load %arg2[%c16, %c0_1] : memref<40x128xf32, #tpu.memory_space<vmem>>, vector<10x9xf32>
    %c32 = arith.constant 32 : index
    %c0_2 = arith.constant 0 : index
    %2 = vector.load %arg2[%c32, %c0_2] : memref<40x128xf32, #tpu.memory_space<vmem>>, vector<1x10xf32>
    %c0_i32 = arith.constant 0 : i32
    %c512_i32 = arith.constant 512 : i32
    %3 = arith.muli %c0_i32, %c512_i32 : i32
    %4 = tpu.assume_multiple %3, 512 : i32
    %c0_3 = arith.constant 0 : index
    %5 = arith.index_cast %4 : i32 to index
    %6 = vector.load %arg1[%c0_3, %5] : memref<8x512xf32, #tpu.memory_space<vmem>>, vector<8x512xf32>
    %cst = arith.constant dense<0.000000e+00> : vector<9x512xf32>
    %7 = tpu.matmul %0, %6, %cst {dimension_numbers = #tpu.dot_dimension_numbers<[1], [0], [0], [1], [0, 0, 1, 1], [], []>} : vector<9x8xf32>, vector<8x512xf32>, vector<9x512xf32> -> vector<9x512xf32>
    %cst_4 = arith.constant 0.000000e+00 : f32
    %8 = vector.broadcast %cst_4 : f32 to vector<9x512xf32>
    %9 = arith.maximumf %7, %8 : vector<9x512xf32>
    %cst_5 = arith.constant dense<0.000000e+00> : vector<10x512xf32>
    %10 = tpu.matmul %1, %9, %cst_5 {dimension_numbers = #tpu.dot_dimension_numbers<[1], [0], [0], [1], [0, 0, 1, 1], [], []>} : vector<10x9xf32>, vector<9x512xf32>, vector<10x512xf32> -> vector<10x512xf32>
    %cst_6 = arith.constant 0.000000e+00 : f32
    %11 = vector.broadcast %cst_6 : f32 to vector<10x512xf32>
    %12 = arith.maximumf %10, %11 : vector<10x512xf32>
    %cst_7 = arith.constant dense<0.000000e+00> : vector<1x512xf32>
    %13 = tpu.matmul %2, %12, %cst_7 {dimension_numbers = #tpu.dot_dimension_numbers<[1], [0], [0], [1], [0, 0, 1, 1], [], []>} : vector<1x10xf32>, vector<10x512xf32>, vector<1x512xf32> -> vector<1x512xf32>
    %c0_8 = arith.constant 0 : index
    %14 = arith.index_cast %4 : i32 to index
    %15 = vector.load %arg3[%c0_8, %14] : memref<1x512xf32, #tpu.memory_space<vmem>>, vector<1x512xf32>
    tpu.vector_store %arg3[%c0_8, %14], %13 {strides = array<i32>} : memref<1x512xf32, #tpu.memory_space<vmem>>, vector<1x512xf32>,
    %c1_i32 = arith.constant 1 : i32
    return
  }
  func.func @transform_0(%arg0: i32) -> (i32, i32) {
    %c0_i32 = arith.constant 0 : i32
    %c0_i32_0 = arith.constant 0 : i32
    return %c0_i32, %arg0 : i32, i32
  }
  func.func @transform_1(%arg0: i32) -> (i32, i32) {
    %c0_i32 = arith.constant 0 : i32
    %c0_i32_0 = arith.constant 0 : i32
    %c0_i32_1 = arith.constant 0 : i32
    return %c0_i32, %c0_i32_0 : i32, i32
  }
  func.func @transform_2(%arg0: i32) -> (i32, i32) {
    %c0_i32 = arith.constant 0 : i32
    %c0_i32_0 = arith.constant 0 : i32
    return %c0_i32, %arg0 : i32, i32
  }
}

</mosaic_0001>

<llo_original>
// kernel: csv_model_forward.1
$region0: #{csv_model_forward.1}
  #allocation0 [shape = 'u32[]', space=smem, size = 0x4, offset = 0x4, fixed_abs, tag = 'smem constant byte address 0x4 - core index']
  #allocation1 [shape = 'u32[72,128]{1,0:T(1,128)}', space=vmem, size = 0x9000, scoped, tag = 'internal scratch']
  %s0 = inlined_call_operand.vmem [shape: f32[8,512], index: 0, kind: input, shape index: {}]
  %s1 = inlined_call_operand.vmem [shape: f32[40,128], index: 1, kind: input, shape index: {}]
  %s2 = inlined_call_operand.vmem [shape: f32[1,512], index: 2, kind: output, shape index: {}]
  %s3 = sld [smem:[#allocation0]]
  $region18: #{csv_model_forward.1} parent=0
    _
  %s5 = ssub.s32 1, %s3
  %s6 = scalar_select 0, %s5, %s3
  // Predicated region
  $region2: #{csv_model_forward.1} parent=0 // pred_check
    _
  $region3: #{csv_model_forward.1} parent=0 // pred_check_branch
    %8 = sbr.rel (0) target = $region5
  $region4: #{csv_model_forward.1} parent=0 // pred_region
    _
  $region5: #{csv_model_forward.1} parent=0 // pred_fallthru
    _
  // Predicated region
  $region6: #{csv_model_forward.1} parent=0 // pred_check
    _
  $region7: #{csv_model_forward.1} parent=0 // pred_check_branch
    %10 = sbr.rel (0) target = $region9
  $region8: #{csv_model_forward.1} parent=0 // pred_region
    _
  $region9: #{csv_model_forward.1} parent=0 // pred_fallthru
    _
  %v11 = vld [vmem:[%s1] sm:$0xff]
  %v12 = vld [vmem:[%s1 + $0x8] sm:$0x1]
  %v13 = vld [vmem:[%s1 + $0x10] sm:$0xff]
  %v14 = vld [vmem:[%s1 + $0x18] sm:$0x3]
  %v15 = vld [vmem:[%s1 + $0x20] sm:$0x1]
  %v16 = vld [vmem:[%s0] sm:$0xff]
  %v17 = vld [vmem:[%s0 + $0x8] sm:$0xff]
  %v18 = vld [vmem:[%s0 + $0x10] sm:$0xff]
  %v19 = vld [vmem:[%s0 + $0x18] sm:$0xff]
  %vm20 = vcmask 64512
  %v22 = vsel %vm20, %v11, 0
  %v25 = vsel %vm20, %v12, 0
  %27 = vmatpush.msra.mxu0 0.0
  %28 = vmatpush.msra.mxu0 0.0
  %29 = vmatpush.msra.mxu0 0.0
  %30 = vmatpush.msra.mxu0 0.0
  %31 = vmatpush.msra.mxu0 0.0
  %32 = vmatpush.msra.mxu0 0.0
  %33 = vmatpush.msra.mxu0 0.0
  %34 = vmatpush.msra.mxu0 0.0
  %35 = vmatpush.msra.mxu0 0.0
  %36 = vmatpush.msra.mxu0 0.0
  %37 = vmatpush.msra.mxu0 0.0
  %38 = vmatpush.msra.mxu0 0.0
  %39 = vmatpush.msra.mxu0 0.0
  %40 = vmatpush.msra.mxu0 0.0
  %41 = vmatpush.msra.mxu0 0.0
  %42 = vmatpush.msra.mxu0 %v16
  %43 = vmatmul.f32.gmra.mxu0 %v22
  %v44 = vpop.f32.mrf.mxu0
  %v45 = vadd.f32 0.0, %v44
  %46 = vmatmul.f32.gmra.mxu0 %v25
  %v47 = vpop.f32.mrf.mxu0
  %v48 = vadd.f32 0.0, %v47
  %49 = vdwg.mxu0
  %50 = vmatpush.msra.mxu0 0.0
  %51 = vmatpush.msra.mxu0 0.0
  %52 = vmatpush.msra.mxu0 0.0
  %53 = vmatpush.msra.mxu0 0.0
  %54 = vmatpush.msra.mxu0 0.0
  %55 = vmatpush.msra.mxu0 0.0
  %56 = vmatpush.msra.mxu0 0.0
  %57 = vmatpush.msra.mxu0 0.0
  %58 = vmatpush.msra.mxu0 0.0
  %59 = vmatpush.msra.mxu0 0.0
  %60 = vmatpush.msra.mxu0 0.0
  %61 = vmatpush.msra.mxu0 0.0
  %62 = vmatpush.msra.mxu0 0.0
  %63 = vmatpush.msra.mxu0 0.0
  %64 = vmatpush.msra.mxu0 0.0
  %65 = vmatpush.msra.mxu0 %v17
  %66 = vmatmul.f32.gmra.mxu0 %v22
  %v67 = vpop.f32.mrf.mxu0
  %v68 = vadd.f32 0.0, %v67
  %69 = vmatmul.f32.gmra.mxu0 %v25
  %v70 = vpop.f32.mrf.mxu0
  %v71 = vadd.f32 0.0, %v70
  %72 = vdwg.mxu0
  %73 = vmatpush.msra.mxu0 0.0
  %74 = vmatpush.msra.mxu0 0.0
  %75 = vmatpush.msra.mxu0 0.0
  %76 = vmatpush.msra.mxu0 0.0
  %77 = vmatpush.msra.mxu0 0.0
  %78 = vmatpush.msra.mxu0 0.0
  %79 = vmatpush.msra.mxu0 0.0
  %80 = vmatpush.msra.mxu0 0.0
  %81 = vmatpush.msra.mxu0 0.0
  %82 = vmatpush.msra.mxu0 0.0
  %83 = vmatpush.msra.mxu0 0.0
  %84 = vmatpush.msra.mxu0 0.0
  %85 = vmatpush.msra.mxu0 0.0
  %86 = vmatpush.msra.mxu0 0.0
  %87 = vmatpush.msra.mxu0 0.0
  %88 = vmatpush.msra.mxu0 %v18
  %89 = vmatmul.f32.gmra.mxu0 %v22
  %v90 = vpop.f32.mrf.mxu0
  %v91 = vadd.f32 0.0, %v90
  %92 = vmatmul.f32.gmra.mxu0 %v25
  %v93 = vpop.f32.mrf.mxu0
  %v94 = vadd.f32 0.0, %v93
  %95 = vdwg.mxu0
  %96 = vmatpush.msra.mxu0 0.0
  %97 = vmatpush.msra.mxu0 0.0
  %98 = vmatpush.msra.mxu0 0.0
  %99 = vmatpush.msra.mxu0 0.0
  %100 = vmatpush.msra.mxu0 0.0
  %101 = vmatpush.msra.mxu0 0.0
  %102 = vmatpush.msra.mxu0 0.0
  %103 = vmatpush.msra.mxu0 0.0
  %104 = vmatpush.msra.mxu0 0.0
  %105 = vmatpush.msra.mxu0 0.0
  %106 = vmatpush.msra.mxu0 0.0
  %107 = vmatpush.msra.mxu0 0.0
  %108 = vmatpush.msra.mxu0 0.0
  %109 = vmatpush.msra.mxu0 0.0
  %110 = vmatpush.msra.mxu0 0.0
  %111 = vmatpush.msra.mxu0 %v19
  %112 = vmatmul.f32.gmra.mxu0 %v22
  %v113 = vpop.f32.mrf.mxu0
  %v114 = vadd.f32 0.0, %v113
  %115 = vmatmul.f32.gmra.mxu0 %v25
  %v116 = vpop.f32.mrf.mxu0
  %v117 = vadd.f32 0.0, %v116
  %118 = vdwg.mxu0
  %v119 = vmax.f32 %v45, 0.0
  %v120 = vmax.f32 %v68, 0.0
  %v121 = vmax.f32 %v91, 0.0
  %v122 = vmax.f32 %v114, 0.0
  %v123 = vmax.f32 %v48, 0.0
  %v124 = vmax.f32 %v71, 0.0
  %v125 = vmax.f32 %v94, 0.0
  %v126 = vmax.f32 %v117, 0.0
  %vm127 = vcmask 72704
  %v129 = vsel %vm127, %v13, 0
  %v132 = vsel %vm127, %v14, 0
  %vm134 = vcmask 1040384
  %v136 = vsel %vm134, %v123, 0
  %v139 = vsel %vm134, %v124, 0
  %v142 = vsel %vm134, %v125, 0
  %v145 = vsel %vm134, %v126, 0
  %147 = vmatpush.msra.mxu0 0.0
  %148 = vmatpush.msra.mxu0 0.0
  %149 = vmatpush.msra.mxu0 0.0
  %150 = vmatpush.msra.mxu0 0.0
  %151 = vmatpush.msra.mxu0 0.0
  %152 = vmatpush.msra.mxu0 0.0
  %153 = vmatpush.msra.mxu0 0.0
  %154 = vmatpush.msra.mxu0 0.0
  %155 = vmatpush.msra.mxu0 0.0
  %156 = vmatpush.msra.mxu0 0.0
  %157 = vmatpush.msra.mxu0 0.0
  %158 = vmatpush.msra.mxu0 0.0
  %159 = vmatpush.msra.mxu0 0.0
  %160 = vmatpush.msra.mxu0 0.0
  %161 = vmatpush.msra.mxu0 %v136
  %162 = vmatpush.msra.mxu0 %v119
  %163 = vmatmul.f32.gmra.mxu0 %v129
  %v164 = vpop.f32.mrf.mxu0
  %v165 = vadd.f32 0.0, %v164
  %166 = vmatmul.f32.gmra.mxu0 %v132
  %v167 = vpop.f32.mrf.mxu0
  %v168 = vadd.f32 0.0, %v167
  %169 = vdwg.mxu0
  %170 = vmatpush.msra.mxu0 0.0
  %171 = vmatpush.msra.mxu0 0.0
  %172 = vmatpush.msra.mxu0 0.0
  %173 = vmatpush.msra.mxu0 0.0
  %174 = vmatpush.msra.mxu0 0.0
  %175 = vmatpush.msra.mxu0 0.0
  %176 = vmatpush.msra.mxu0 0.0
  %177 = vmatpush.msra.mxu0 0.0
  %178 = vmatpush.msra.mxu0 0.0
  %179 = vmatpush.msra.mxu0 0.0
  %180 = vmatpush.msra.mxu0 0.0
  %181 = vmatpush.msra.mxu0 0.0
  %182 = vmatpush.msra.mxu0 0.0
  %183 = vmatpush.msra.mxu0 0.0
  %184 = vmatpush.msra.mxu0 %v139
  %185 = vmatpush.msra.mxu0 %v120
  %186 = vmatmul.f32.gmra.mxu0 %v129
  %v187 = vpop.f32.mrf.mxu0
  %v188 = vadd.f32 0.0, %v187
  %189 = vmatmul.f32.gmra.mxu0 %v132
  %v190 = vpop.f32.mrf.mxu0
  %v191 = vadd.f32 0.0, %v190
  %192 = vdwg.mxu0
  %193 = vmatpush.msra.mxu0 0.0
  %194 = vmatpush.msra.mxu0 0.0
  %195 = vmatpush.msra.mxu0 0.0
  %196 = vmatpush.msra.mxu0 0.0
  %197 = vmatpush.msra.mxu0 0.0
  %198 = vmatpush.msra.mxu0 0.0
  %199 = vmatpush.msra.mxu0 0.0
  %200 = vmatpush.msra.mxu0 0.0
  %201 = vmatpush.msra.mxu0 0.0
  %202 = vmatpush.msra.mxu0 0.0
  %203 = vmatpush.msra.mxu0 0.0
  %204 = vmatpush.msra.mxu0 0.0
  %205 = vmatpush.msra.mxu0 0.0
  %206 = vmatpush.msra.mxu0 0.0
  %207 = vmatpush.msra.mxu0 %v142
  %208 = vmatpush.msra.mxu0 %v121
  %209 = vmatmul.f32.gmra.mxu0 %v129
  %v210 = vpop.f32.mrf.mxu0
  %v211 = vadd.f32 0.0, %v210
  %212 = vmatmul.f32.gmra.mxu0 %v132
  %v213 = vpop.f32.mrf.mxu0
  %v214 = vadd.f32 0.0, %v213
  %215 = vdwg.mxu0
  %216 = vmatpush.msra.mxu0 0.0
  %217 = vmatpush.msra.mxu0 0.0
  %218 = vmatpush.msra.mxu0 0.0
  %219 = vmatpush.msra.mxu0 0.0
  %220 = vmatpush.msra.mxu0 0.0
  %221 = vmatpush.msra.mxu0 0.0
  %222 = vmatpush.msra.mxu0 0.0
  %223 = vmatpush.msra.mxu0 0.0
  %224 = vmatpush.msra.mxu0 0.0
  %225 = vmatpush.msra.mxu0 0.0
  %226 = vmatpush.msra.mxu0 0.0
  %227 = vmatpush.msra.mxu0 0.0
  %228 = vmatpush.msra.mxu0 0.0
  %229 = vmatpush.msra.mxu0 0.0
  %230 = vmatpush.msra.mxu0 %v145
  %231 = vmatpush.msra.mxu0 %v122
  %232 = vmatmul.f32.gmra.mxu0 %v129
  %v233 = vpop.f32.mrf.mxu0
  %v234 = vadd.f32 0.0, %v233
  %235 = vmatmul.f32.gmra.mxu0 %v132
  %v236 = vpop.f32.mrf.mxu0
  %v237 = vadd.f32 0.0, %v236
  %238 = vdwg.mxu0
  %v239 = vmax.f32 %v165, 0.0
  %v240 = vmax.f32 %v188, 0.0
  %v241 = vmax.f32 %v211, 0.0
  %v242 = vmax.f32 %v234, 0.0
  %v243 = vmax.f32 %v168, 0.0
  %v244 = vmax.f32 %v191, 0.0
  %v245 = vmax.f32 %v214, 0.0
  %v246 = vmax.f32 %v237, 0.0
  %vm247 = vcmask 80896
  %v249 = vsel %vm247, %v15, 0
  %vm251 = vcmask 1041408
  %v253 = vsel %vm251, %v243, 0
  %v256 = vsel %vm251, %v244, 0
  %v259 = vsel %vm251, %v245, 0
  %v262 = vsel %vm251, %v246, 0
  %264 = vmatpush.msra.mxu0 0.0
  %265 = vmatpush.msra.mxu0 0.0
  %266 = vmatpush.msra.mxu0 0.0
  %267 = vmatpush.msra.mxu0 0.0
  %268 = vmatpush.msra.mxu0 0.0
  %269 = vmatpush.msra.mxu0 0.0
  %270 = vmatpush.msra.mxu0 0.0
  %271 = vmatpush.msra.mxu0 0.0
  %272 = vmatpush.msra.mxu0 0.0
  %273 = vmatpush.msra.mxu0 0.0
  %274 = vmatpush.msra.mxu0 0.0
  %275 = vmatpush.msra.mxu0 0.0
  %276 = vmatpush.msra.mxu0 0.0
  %277 = vmatpush.msra.mxu0 0.0
  %278 = vmatpush.msra.mxu0 %v253
  %279 = vmatpush.msra.mxu0 %v239
  %280 = vmatmul.f32.gmra.mxu0 %v249
  %v281 = vpop.f32.mrf.mxu0
  %v282 = vadd.f32 0.0, %v281
  %283 = vdwg.mxu0
  %284 = vmatpush.msra.mxu0 0.0
  %285 = vmatpush.msra.mxu0 0.0
  %286 = vmatpush.msra.mxu0 0.0
  %287 = vmatpush.msra.mxu0 0.0
  %288 = vmatpush.msra.mxu0 0.0
  %289 = vmatpush.msra.mxu0 0.0
  %290 = vmatpush.msra.mxu0 0.0
  %291 = vmatpush.msra.mxu0 0.0
  %292 = vmatpush.msra.mxu0 0.0
  %293 = vmatpush.msra.mxu0 0.0
  %294 = vmatpush.msra.mxu0 0.0
  %295 = vmatpush.msra.mxu0 0.0
  %296 = vmatpush.msra.mxu0 0.0
  %297 = vmatpush.msra.mxu0 0.0
  %298 = vmatpush.msra.mxu0 %v256
  %299 = vmatpush.msra.mxu0 %v240
  %300 = vmatmul.f32.gmra.mxu0 %v249
  %v301 = vpop.f32.mrf.mxu0
  %v302 = vadd.f32 0.0, %v301
  %303 = vdwg.mxu0
  %304 = vmatpush.msra.mxu0 0.0
  %305 = vmatpush.msra.mxu0 0.0
  %306 = vmatpush.msra.mxu0 0.0
  %307 = vmatpush.msra.mxu0 0.0
  %308 = vmatpush.msra.mxu0 0.0
  %309 = vmatpush.msra.mxu0 0.0
  %310 = vmatpush.msra.mxu0 0.0
  %311 = vmatpush.msra.mxu0 0.0
  %312 = vmatpush.msra.mxu0 0.0
  %313 = vmatpush.msra.mxu0 0.0
  %314 = vmatpush.msra.mxu0 0.0
  %315 = vmatpush.msra.mxu0 0.0
  %316 = vmatpush.msra.mxu0 0.0
  %317 = vmatpush.msra.mxu0 0.0
  %318 = vmatpush.msra.mxu0 %v259
  %319 = vmatpush.msra.mxu0 %v241
  %320 = vmatmul.f32.gmra.mxu0 %v249
  %v321 = vpop.f32.mrf.mxu0
  %v322 = vadd.f32 0.0, %v321
  %323 = vdwg.mxu0
  %324 = vmatpush.msra.mxu0 0.0
  %325 = vmatpush.msra.mxu0 0.0
  %326 = vmatpush.msra.mxu0 0.0
  %327 = vmatpush.msra.mxu0 0.0
  %328 = vmatpush.msra.mxu0 0.0
  %329 = vmatpush.msra.mxu0 0.0
  %330 = vmatpush.msra.mxu0 0.0
  %331 = vmatpush.msra.mxu0 0.0
  %332 = vmatpush.msra.mxu0 0.0
  %333 = vmatpush.msra.mxu0 0.0
  %334 = vmatpush.msra.mxu0 0.0
  %335 = vmatpush.msra.mxu0 0.0
  %336 = vmatpush.msra.mxu0 0.0
  %337 = vmatpush.msra.mxu0 0.0
  %338 = vmatpush.msra.mxu0 %v262
  %339 = vmatpush.msra.mxu0 %v242
  %340 = vmatmul.f32.gmra.mxu0 %v249
  %v341 = vpop.f32.mrf.mxu0
  %v342 = vadd.f32 0.0, %v341
  %343 = vdwg.mxu0
  %v348 = vrot.slane %v302, 7
  %v349 = vrot.slane %v322, 6
  %v350 = vrot.slane %v342, 5
  %v351 = vsel %vm134, %v282, %v348
  %vm352 = vcmask 1042434
  %v353 = vsel %vm352, %v349, %v350
  %v354 = vsel %vm251, %v351, %v353
  %v356 = vlaneseq
  %vm357 = vcmp.ge.s32.totalorder %v356, 0
  %vm358 = vcmp.lt.s32.totalorder %v356, 512
  %vm359 = vmand %vm357, %vm358
  %360 = vst.msk [vmem:[%s2] sm:$0xf] %vm359, %v354
  // Predicated region
  $region10: #{csv_model_forward.1} parent=0 // pred_check
    _
  $region11: #{csv_model_forward.1} parent=0 // pred_check_branch
    %362 = sbr.rel (0) target = $region13
  $region12: #{csv_model_forward.1} parent=0 // pred_region
    _
  $region13: #{csv_model_forward.1} parent=0 // pred_fallthru
    _
  // Predicated region
  $region14: #{csv_model_forward.1} parent=0 // pred_check
    _
  $region15: #{csv_model_forward.1} parent=0 // pred_check_branch
    %364 = sbr.rel (0) target = $region17
  $region16: #{csv_model_forward.1} parent=0 // pred_region
    _
  $region17: #{csv_model_forward.1} parent=0 // pred_fallthru
    _

</llo_original>
